<compile_context>
chip_gen: v5e
topology: v5e:2x2
jax: 0.10.0
libtpu: 0.0.40
codegen_flags: <defaults>
</compile_context>

<pallas_src>
import jax
import jax.numpy as jnp
from jax.experimental import pallas as pl
from jax.experimental.pallas import tpu as pltpu


def _round_up(x, m):
    return ((x + m - 1) // m) * m


def _pick_tile(padded_dim, unit, max_tile):
    """Largest multiple of `unit` that divides `padded_dim` and is <= max_tile."""
    q = padded_dim // unit
    best, d = 1, 1
    while d <= q and d * unit <= max_tile:
        if q % d == 0:
            best = d
        d += 1
    return best * unit


# ---------------- kernels ----------------
# f32 output: accumulate directly into the (resident) output block, no scratch.
def _kernel_out_acc_bias(x_ref, w_ref, b_ref, o_ref):
    k = pl.program_id(2)
    part = jnp.dot(x_ref[...], w_ref[...], preferred_element_type=jnp.float32)

    @pl.when(k == 0)
    def _():
        o_ref[...] = part

    @pl.when(k > 0)
    def _():
        o_ref[...] += part

    @pl.when(k == pl.num_programs(2) - 1)
    def _():
        o_ref[...] += b_ref[...]


def _kernel_out_acc_nobias(x_ref, w_ref, o_ref):
    k = pl.program_id(2)
    part = jnp.dot(x_ref[...], w_ref[...], preferred_element_type=jnp.float32)

    @pl.when(k == 0)
    def _():
        o_ref[...] = part

    @pl.when(k > 0)
    def _():
        o_ref[...] += part


# non-f32 output: f32 VMEM scratch accumulator, cast in finalize.
def _kernel_scratch_bias(x_ref, w_ref, b_ref, o_ref, acc_ref):
    k = pl.program_id(2)
    part = jnp.dot(x_ref[...], w_ref[...], preferred_element_type=jnp.float32)

    @pl.when(k == 0)
    def _():
        acc_ref[...] = part

    @pl.when(k > 0)
    def _():
        acc_ref[...] += part

    @pl.when(k == pl.num_programs(2) - 1)
    def _():
        o_ref[...] = (acc_ref[...] + b_ref[...]).astype(o_ref.dtype)


def _kernel_scratch_nobias(x_ref, w_ref, o_ref, acc_ref):
    k = pl.program_id(2)
    part = jnp.dot(x_ref[...], w_ref[...], preferred_element_type=jnp.float32)

    @pl.when(k == 0)
    def _():
        acc_ref[...] = part

    @pl.when(k > 0)
    def _():
        acc_ref[...] += part

    @pl.when(k == pl.num_programs(2) - 1)
    def _():
        o_ref[...] = acc_ref[...].astype(o_ref.dtype)


# ---------------- wrapper ----------------
def poincare_ball_linear(x, weight, bias=None, *, curvature=1.0, compute_dtype=None):
    """Pallas equivalent of PoincareBallLinear.forward.

    x:      [..., in_features]
    weight: [out_features, in_features]
    bias:   [out_features] or None
    compute_dtype: optional MXU operand dtype (e.g. jnp.bfloat16); accumulation
                   and bias add stay in f32.
    """
    del curvature  # hyperbolic branch is dead code in the reference module.
    N, K = weight.shape
    assert x.shape[-1] == K

    lead = x.shape[:-1]
    M = 1
    for d in lead:
        M *= int(d)

    out_dtype = x.dtype
    x2d = x.reshape(M, K)
    wt = weight.T  # single O(N*K) transpose, amortized over all M-blocks.

    # Minimal alignment padding: M -> 8, N/K -> 128.
    Mp = _round_up(max(M, 1), 8)
    Np = _round_up(N, 128)
    Kp = _round_up(K, 128)

    # Tiles divide the padded dims exactly; up to 512 per side (~7 MiB total
    # double-buffered footprint in f32, comfortably within every generation's
    # VMEM including v7x's 64 MiB per core).
    tm = _pick_tile(Mp, 8, 512)
    tn = _pick_tile(Np, 128, 512)
    tk = _pick_tile(Kp, 128, 512)

    if compute_dtype is not None:
        x2d = x2d.astype(compute_dtype)
        wt = wt.astype(compute_dtype)

    xp = x2d if (Mp, Kp) == (M, K) else jnp.pad(x2d, ((0, Mp - M), (0, Kp - K)))
    wp = wt if (Kp, Np) == (K, N) else jnp.pad(wt, ((0, Kp - K), (0, Np - N)))

    grid = (Mp // tm, Np // tn, Kp // tk)

    in_specs = [
        pl.BlockSpec((tm, tk), lambda i, j, k: (i, k)),   # x tile
        pl.BlockSpec((tk, tn), lambda i, j, k: (k, j)),   # W^T tile [K, N]
    ]
    args = [xp, wp]

    if bias is not None:
        bp = bias.astype(jnp.float32)  # bias add stays in f32 inside the kernel
        if Np != N:
            bp = jnp.pad(bp, (0, Np - N))
        args.append(bp.reshape(1, Np))
        in_specs.append(pl.BlockSpec((1, tn), lambda i, j, k: (0, j)))

    acc_into_out = out_dtype == jnp.float32
    if acc_into_out:
        kernel = _kernel_out_acc_bias if bias is not None else _kernel_out_acc_nobias
        scratch_shapes = []
    else:
        kernel = _kernel_scratch_bias if bias is not None else _kernel_scratch_nobias
        scratch_shapes = [pltpu.VMEM((tm, tn), jnp.float32)]

    in_bytes = jnp.dtype(xp.dtype).itemsize
    out_bytes = jnp.dtype(out_dtype).itemsize
    cost = pl.CostEstimate(
        flops=2 * Mp * Np * Kp,
        transcendentals=0,
        bytes_accessed=(Mp * Kp * (Np // tn) + Kp * Np * (Mp // tm)) * in_bytes
        + Mp * Np * out_bytes,
    )

    # Double-buffered x/W/out tiles (+ scratch acc + bias), with 2x headroom,
    # clamped to [16 MiB, 48 MiB] so it never exceeds v7x's 64 MiB per core.
    footprint = (
        (2 * tm * tk + 2 * tk * tn) * in_bytes
        + 2 * tm * tn * out_bytes
        + (0 if acc_into_out else tm * tn * 4)
        + 2 * tn * 4
    )
    vmem_limit = int(min(max(2 * footprint, 16 << 20), 48 << 20))

    out_p = pl.pallas_call(
        kernel,
        out_shape=jax.ShapeDtypeStruct((Mp, Np), out_dtype),
        grid_spec=pltpu.PrefetchScalarGridSpec(
            num_scalar_prefetch=0,
            grid=grid,
            in_specs=in_specs,
            out_specs=pl.BlockSpec((tm, tn), lambda i, j, k: (i, j)),
            scratch_shapes=scratch_shapes,
        ),
        compiler_params=pltpu.CompilerParams(
            dimension_semantics=("parallel", "parallel", "arbitrary"),
            vmem_limit_bytes=vmem_limit,
        ),
        cost_estimate=cost,
    )(*args)

    out2d = out_p if (Mp, Np) == (M, N) else out_p[:M, :N]
    return out2d.reshape(*lead, N)


if __name__ == "__main__":
    # Shapes consistent with the module: batch=2, seq=8, hidden 32 -> 64.
    in_features, out_features = 32, 64
    batch, seq = 2, 8

    key = jax.random.PRNGKey(0)
    kx, kw = jax.random.split(key)

    # Parameter init mirroring __init__: weight = randn(out, in) * 0.1, bias = 0.
    weight = jax.random.normal(kw, (out_features, in_features), dtype=jnp.float32) * 0.1
    bias = jnp.zeros((out_features,), dtype=jnp.float32)
    x = jax.random.normal(kx, (batch, seq, in_features), dtype=jnp.float32)

    # With bias.
    out = jax.block_until_ready(poincare_ball_linear(x, weight, bias))
    ref = x @ weight.T + bias
    assert out.shape == (batch, seq, out_features)
    assert jnp.allclose(out, ref, atol=1e-5, rtol=1e-5)

    # bias=False path (module supports it).
    out_nb = jax.block_until_ready(poincare_ball_linear(x, weight, None))
    ref_nb = x @ weight.T
    assert jnp.allclose(out_nb, ref_nb, atol=1e-5, rtol=1e-5)

    print("KERNEL_OK")
</pallas_src>

<mosaic_0001>
module attributes {stable_mosaic.version = 11 : i64} {
  func.func @_kernel_out_acc_bias(%arg0: i32, %arg1: i32, %arg2: i32, %arg3: memref<16x128xf32, #tpu.memory_space<vmem>>, %arg4: memref<128x128xf32, #tpu.memory_space<vmem>>, %arg5: memref<1x128xf32, #tpu.memory_space<vmem>>, %arg6: memref<16x128xf32, #tpu.memory_space<vmem>>) attributes {dimension_semantics = [#tpu.dimension_semantics<parallel>, #tpu.dimension_semantics<parallel>, #tpu.dimension_semantics<arbitrary>], iteration_bounds = array<i64: 1, 1, 1>, scalar_prefetch = 0 : i64, scratch_operands = 0 : i64, tpu.core_type = #tpu.core_type<tc>, window_params = [{transform_indices = @transform_0, window_bounds = array<i64: 16, 128>}, {transform_indices = @transform_1, window_bounds = array<i64: 128, 128>}, {transform_indices = @transform_2, window_bounds = array<i64: 1, 128>}, {transform_indices = @transform_3, window_bounds = array<i64: 16, 128>}]} {
    %c0 = arith.constant 0 : index
    %c0_0 = arith.constant 0 : index
    %0 = vector.load %arg3[%c0, %c0_0] : memref<16x128xf32, #tpu.memory_space<vmem>>, vector<16x128xf32>
    %c0_1 = arith.constant 0 : index
    %c0_2 = arith.constant 0 : index
    %1 = vector.load %arg4[%c0_1, %c0_2] : memref<128x128xf32, #tpu.memory_space<vmem>>, vector<128x128xf32>
    %cst = arith.constant dense<0.000000e+00> : vector<16x128xf32>
    %2 = tpu.matmul %0, %1, %cst {dimension_numbers = #tpu.dot_dimension_numbers<[1], [0], [0], [1], [0, 0, 1, 1], [], []>} : vector<16x128xf32>, vector<128x128xf32>, vector<16x128xf32> -> vector<16x128xf32>
    %c0_i32 = arith.constant 0 : i32
    %3 = arith.cmpi eq, %arg2, %c0_i32 : i32
    %4 = arith.extui %3 : i1 to i32
    %c0_i32_3 = arith.constant 0 : i32
    %5 = arith.cmpi ne, %4, %c0_i32_3 : i32
    scf.if %5 {
      %c0_8 = arith.constant 0 : index
      %c0_9 = arith.constant 0 : index
      %12 = vector.load %arg6[%c0_8, %c0_9] : memref<16x128xf32, #tpu.memory_space<vmem>>, vector<16x128xf32>
      tpu.vector_store %arg6[%c0_8, %c0_9], %2 {strides = array<i32>} : memref<16x128xf32, #tpu.memory_space<vmem>>, vector<16x128xf32>,
    } else {
    }
    %c0_i32_4 = arith.constant 0 : i32
    %6 = arith.cmpi sgt, %arg2, %c0_i32_4 : i32
    %7 = arith.extui %6 : i1 to i32
    %c0_i32_5 = arith.constant 0 : i32
    %8 = arith.cmpi ne, %7, %c0_i32_5 : i32
    scf.if %8 {
      %c0_8 = arith.constant 0 : index
      %c0_9 = arith.constant 0 : index
      %12 = vector.load %arg6[%c0_8, %c0_9] : memref<16x128xf32, #tpu.memory_space<vmem>>, vector<16x128xf32>
      %13 = arith.addf %12, %2 : vector<16x128xf32>
      %c0_10 = arith.constant 0 : index
      %c0_11 = arith.constant 0 : index
      %14 = vector.load %arg6[%c0_10, %c0_11] : memref<16x128xf32, #tpu.memory_space<vmem>>, vector<16x128xf32>
      tpu.vector_store %arg6[%c0_10, %c0_11], %13 {strides = array<i32>} : memref<16x128xf32, #tpu.memory_space<vmem>>, vector<16x128xf32>,
    } else {
    }
    %c0_i32_6 = arith.constant 0 : i32
    %9 = arith.cmpi eq, %arg2, %c0_i32_6 : i32
    %10 = arith.extui %9 : i1 to i32
    %c0_i32_7 = arith.constant 0 : i32
    %11 = arith.cmpi ne, %10, %c0_i32_7 : i32
    scf.if %11 {
      %c0_8 = arith.constant 0 : index
      %c0_9 = arith.constant 0 : index
      %12 = vector.load %arg6[%c0_8, %c0_9] : memref<16x128xf32, #tpu.memory_space<vmem>>, vector<16x128xf32>
      %c0_10 = arith.constant 0 : index
      %c0_11 = arith.constant 0 : index
      %13 = vector.load %arg5[%c0_10, %c0_11] : memref<1x128xf32, #tpu.memory_space<vmem>>, vector<1x128xf32>
      %14 = vector.broadcast %13 : vector<1x128xf32> to vector<16x128xf32>
      %15 = arith.addf %12, %14 : vector<16x128xf32>
      %c0_12 = arith.constant 0 : index
      %c0_13 = arith.constant 0 : index
      %16 = vector.load %arg6[%c0_12, %c0_13] : memref<16x128xf32, #tpu.memory_space<vmem>>, vector<16x128xf32>
      tpu.vector_store %arg6[%c0_12, %c0_13], %15 {strides = array<i32>} : memref<16x128xf32, #tpu.memory_space<vmem>>, vector<16x128xf32>,
    } else {
    }
    return
  }
  func.func @transform_0(%arg0: i32, %arg1: i32, %arg2: i32) -> (i32, i32) {
    %c0_i32 = arith.constant 0 : i32
    return %arg0, %arg2 : i32, i32
  }
  func.func @transform_1(%arg0: i32, %arg1: i32, %arg2: i32) -> (i32, i32) {
    %c0_i32 = arith.constant 0 : i32
    return %arg2, %arg1 : i32, i32
  }
  func.func @transform_2(%arg0: i32, %arg1: i32, %arg2: i32) -> (i32, i32) {
    %c0_i32 = arith.constant 0 : i32
    %c0_i32_0 = arith.constant 0 : i32
    return %c0_i32, %arg1 : i32, i32
  }
  func.func @transform_3(%arg0: i32, %arg1: i32, %arg2: i32) -> (i32, i32) {
    %c0_i32 = arith.constant 0 : i32
    return %arg0, %arg1 : i32, i32
  }
}

</mosaic_0001>

<llo_original>
// kernel: tpu_custom_call.1
$region0: #{tpu_custom_call.1}
  #allocation0 [shape = 'u32[]', space=smem, size = 0x4, offset = 0x4, fixed_abs, tag = 'smem constant byte address 0x4 - core index']
  #allocation1 [shape = 'u32[72,128]{1,0:T(1,128)}', space=vmem, size = 0x9000, scoped, tag = 'internal scratch']
  %s0 = inlined_call_operand.hbm [shape: f32[16,128], index: 0, kind: input, shape index: {}]
  %s1 = inlined_call_operand.hbm [shape: f32[128,128], index: 1, kind: input, shape index: {}]
  %s2 = inlined_call_operand.vmem [shape: f32[1,128], index: 2, kind: input, shape index: {}]
  %s3 = inlined_call_operand.hbm [shape: f32[16,128], index: 3, kind: output, shape index: {}]
  %s4 = sld [smem:[#allocation0]]
  $region42: #{tpu_custom_call.1} parent=0
    _
  %s6 = ssub.s32 1, %s4
  %s7 = scalar_select 0, %s6, %s4
  $region1: #{tpu_custom_call.1} parent=0
    #allocation2 [shape = 'u8[8192]{0}', space=vmem, size = 0x2000, scoped, tag = 'input window, operand 0, single buffered']
    #allocation3 [shape = 's32[1]{0}', space=sflag, size = 0x4, scoped, tag = 'scoped memory for tpu_custom_call.1']
    #allocation4 [shape = 's32[1]{0}', space=sflag, size = 0x4, scoped, tag = 'scoped memory for tpu_custom_call.1']
    #allocation5 [shape = 'u8[65536]{0}', space=vmem, size = 0x10000, scoped, tag = 'input window, operand 1, single buffered']
    #allocation6 [shape = 's32[1]{0}', space=sflag, size = 0x4, scoped, tag = 'scoped memory for tpu_custom_call.1']
    #allocation7 [shape = 'u8[8192]{0}', space=vmem, size = 0x2000, scoped, tag = 'output window, operand 0, single buffered']
    %8 = vsyncpa [#allocation3], 0
    %9 = vsyncpa [#allocation6], 0
    %10 = vsyncpa [#allocation4], 0
    // Predicated region
    $region2: #{tpu_custom_call.1} parent=1 // pred_check
      _
    $region3: #{tpu_custom_call.1} parent=1 // pred_check_branch
      %12 = sbr.rel (0) target = $region5
    $region4: #{tpu_custom_call.1} parent=1 // pred_region
      %14 = vsyncadd [#allocation3], 0
      %s15 = sshll.u32 %s0, 4
      %s16 = int_to_ptr.hbm [resolvable:$true] %s15
      %s17 = sshll.u32 [#allocation2], 4
      %s18 = int_to_ptr.vmem [resolvable:$true] %s17
      %23 = dma.hbm_to_vmem [thread:$0]  %s16, 256, %s18, [#allocation3], 128, 128, 8
    $region5: #{tpu_custom_call.1} parent=1 // pred_fallthru
      _
    // Predicated region
    $region6: #{tpu_custom_call.1} parent=1 // pred_check
      _
    $region7: #{tpu_custom_call.1} parent=1 // pred_check_branch
      %25 = sbr.rel (0) target = $region9
    $region8: #{tpu_custom_call.1} parent=1 // pred_region
      %27 = vsyncadd [#allocation6], 0
      %s28 = sshll.u32 %s1, 4
      %s29 = int_to_ptr.hbm [resolvable:$true] %s28
      %s30 = sshll.u32 [#allocation5], 4
      %s31 = int_to_ptr.vmem [resolvable:$true] %s30
      %36 = dma.hbm_to_vmem [thread:$0]  %s29, 2048, %s31, [#allocation6], 128, 128, 8
    $region9: #{tpu_custom_call.1} parent=1 // pred_fallthru
      _
    // Predicated region
    $region10: #{tpu_custom_call.1} parent=1 // pred_check
      _
    $region11: #{tpu_custom_call.1} parent=1 // pred_check_branch
      %38 = sbr.rel (0) target = $region13
    $region12: #{tpu_custom_call.1} parent=1 // pred_region
      _
    $region13: #{tpu_custom_call.1} parent=1 // pred_fallthru
      _
    // Predicated region
    $region14: #{tpu_custom_call.1} parent=1 // pred_check
      _
    $region15: #{tpu_custom_call.1} parent=1 // pred_check_branch
      %40 = sbr.rel (0) target = $region17
    $region16: #{tpu_custom_call.1} parent=1 // pred_region
      %42 = dma.done [#allocation3], 256
    $region17: #{tpu_custom_call.1} parent=1 // pred_fallthru
      _
    // Predicated region
    $region18: #{tpu_custom_call.1} parent=1 // pred_check
      _
    $region19: #{tpu_custom_call.1} parent=1 // pred_check_branch
      %44 = sbr.rel (0) target = $region21
    $region20: #{tpu_custom_call.1} parent=1 // pred_region
      %46 = dma.done [#allocation6], 2048
    $region21: #{tpu_custom_call.1} parent=1 // pred_fallthru
      _
    %v47 = vld [vmem:[#allocation2] sm:$0xff]
    %v48 = vld [vmem:[#allocation2 + $0x8] sm:$0xff]
    %v49 = vld [vmem:[#allocation5] sm:$0xff]
    %v50 = vld [vmem:[#allocation5 + $0x8] sm:$0xff]
    %v51 = vld [vmem:[#allocation5 + $0x10] sm:$0xff]
    %v52 = vld [vmem:[#allocation5 + $0x18] sm:$0xff]
    %v53 = vld [vmem:[#allocation5 + $0x20] sm:$0xff]
    %v54 = vld [vmem:[#allocation5 + $0x28] sm:$0xff]
    %v55 = vld [vmem:[#allocation5 + $0x30] sm:$0xff]
    %v56 = vld [vmem:[#allocation5 + $0x38] sm:$0xff]
    %v57 = vld [vmem:[#allocation5 + $0x40] sm:$0xff]
    %v58 = vld [vmem:[#allocation5 + $0x48] sm:$0xff]
    %v59 = vld [vmem:[#allocation5 + $0x50] sm:$0xff]
    %v60 = vld [vmem:[#allocation5 + $0x58] sm:$0xff]
    %v61 = vld [vmem:[#allocation5 + $0x60] sm:$0xff]
    %v62 = vld [vmem:[#allocation5 + $0x68] sm:$0xff]
    %v63 = vld [vmem:[#allocation5 + $0x70] sm:$0xff]
    %v64 = vld [vmem:[#allocation5 + $0x78] sm:$0xff]
    %65 = vmatpush.msra.mxu0 %v64
    %66 = vmatpush.msra.mxu0 %v63
    %67 = vmatpush.msra.mxu0 %v62
    %68 = vmatpush.msra.mxu0 %v61
    %69 = vmatpush.msra.mxu0 %v60
    %70 = vmatpush.msra.mxu0 %v59
    %71 = vmatpush.msra.mxu0 %v58
    %72 = vmatpush.msra.mxu0 %v57
    %73 = vmatpush.msra.mxu0 %v56
    %74 = vmatpush.msra.mxu0 %v55
    %75 = vmatpush.msra.mxu0 %v54
    %76 = vmatpush.msra.mxu0 %v53
    %77 = vmatpush.msra.mxu0 %v52
    %78 = vmatpush.msra.mxu0 %v51
    %79 = vmatpush.msra.mxu0 %v50
    %80 = vmatpush.msra.mxu0 %v49
    %81 = vmatmul.f32.gmra.mxu0 %v47
    %v82 = vpop.f32.mrf.mxu0
    %v83 = vadd.f32 0.0, %v82
    %84 = vmatmul.f32.gmra.mxu0 %v48
    %v85 = vpop.f32.mrf.mxu0
    %v86 = vadd.f32 0.0, %v85
    %87 = vdwg.mxu0
    %p88 = scmp.eq.s32.totalorder 0, 0
    // Predicated region
    $region22: #{tpu_custom_call.1} parent=1 // pred_check
      %p89 = pneg %p88
    $region23: #{tpu_custom_call.1} parent=1 // pred_check_branch
      %91 = sbr.rel (%p89) target = $region25
    $region24: #{tpu_custom_call.1} parent=1 // pred_region
      %92 = vst [vmem:[#allocation7] sm:$0xff] %v83
      %93 = vst [vmem:[#allocation7 + $0x8] sm:$0xff] %v86
    $region25: #{tpu_custom_call.1} parent=1 // pred_fallthru
      _
    %p94 = scmp.gt.s32.totalorder 0, 0
    // Predicated region
    $region26: #{tpu_custom_call.1} parent=1 // pred_check
      %p95 = pneg %p94
    $region27: #{tpu_custom_call.1} parent=1 // pred_check_branch
      %97 = sbr.rel (%p95) target = $region29
    $region28: #{tpu_custom_call.1} parent=1 // pred_region
      %v98 = vld [vmem:[#allocation7] sm:$0xff]
      %v99 = vld [vmem:[#allocation7 + $0x8] sm:$0xff]
      %v100 = vadd.f32 %v98, %v83
      %v101 = vadd.f32 %v99, %v86
      %102 = vst [vmem:[#allocation7] sm:$0xff] %v100
      %103 = vst [vmem:[#allocation7 + $0x8] sm:$0xff] %v101
    $region29: #{tpu_custom_call.1} parent=1 // pred_fallthru
      _
    // Predicated region
    $region30: #{tpu_custom_call.1} parent=1 // pred_check
      %p104 = pneg %p88
    $region31: #{tpu_custom_call.1} parent=1 // pred_check_branch
      %106 = sbr.rel (%p104) target = $region33
    $region32: #{tpu_custom_call.1} parent=1 // pred_region
      %v107 = vld [vmem:[#allocation7] sm:$0xff]
      %v108 = vld [vmem:[#allocation7 + $0x8] sm:$0xff]
      %v109 = vld [vmem:[%s2] sm:$0x1]
      %v111 = vperm.slane %v109, 0
      %v113 = vadd.f32 %v107, %v111
      %v114 = vadd.f32 %v108, %v111
      %115 = vst [vmem:[#allocation7] sm:$0xff] %v113
      %116 = vst [vmem:[#allocation7 + $0x8] sm:$0xff] %v114
    $region33: #{tpu_custom_call.1} parent=1 // pred_fallthru
      _
    // Predicated region
    $region34: #{tpu_custom_call.1} parent=1 // pred_check
      _
    $region35: #{tpu_custom_call.1} parent=1 // pred_check_branch
      %118 = sbr.rel (0) target = $region37
    $region36: #{tpu_custom_call.1} parent=1 // pred_region
      %120 = vsyncadd [#allocation4], 0
      %s121 = sshll.u32 [#allocation7], 4
      %s122 = int_to_ptr.vmem [resolvable:$true] %s121
      %s123 = sshll.u32 %s3, 4
      %s124 = int_to_ptr.hbm [resolvable:$true] %s123
      %129 = dma.vmem_to_hbm [thread:$0]  %s122, 256, %s124, [#allocation4], 128, 128, 8
    $region37: #{tpu_custom_call.1} parent=1 // pred_fallthru
      _
    // Predicated region
    $region38: #{tpu_custom_call.1} parent=1 // pred_check
      _
    $region39: #{tpu_custom_call.1} parent=1 // pred_check_branch
      %131 = sbr.rel (0) target = $region41
    $region40: #{tpu_custom_call.1} parent=1 // pred_region
      %133 = dma.done [#allocation4], 256
    $region41: #{tpu_custom_call.1} parent=1 // pred_fallthru
      _
    %134 = vsyncpa [#allocation3], 1
    %135 = vsyncpa [#allocation6], 1
    %136 = vsyncpa [#allocation4], 1

</llo_original>
